<compile_context>
chip_gen: v6e
topology: v6e:2x2x1
jax: 0.10.0
libtpu: 0.0.40
codegen_flags: <defaults>
</compile_context>

<pallas_src>
import functools

import jax
import jax.numpy as jnp
from jax.experimental import pallas as pl
from jax.experimental.pallas import tpu as pltpu

# Module hyper-parameters (deterministic, from __init__ defaults).
GAMMA_NEG = 4.0
GAMMA_POS = 1.0
CLIP = 0.05
EPS = 1e-05


def _round_up(v, m):
    return (v + m - 1) // m * m


def _sublane_multiple(dtype):
    # f32 -> 8, bf16 -> 16, int8/fp8 -> 32 (second-minor tiling granularity).
    return max(8, 32 // jnp.dtype(dtype).itemsize)


def _choose_tiles(B, C, sub, bytes_per_elem, target_bytes=2 << 20, max_col_tile=2048):
    """Pick (row_tile, col_tile): multiples of (sub, 128); combined x+y block
    bytes <= target_bytes so double-buffered inputs (~2x target) fit the scoped
    VMEM budget on every generation while staying near the HBM roofline."""
    c_pad = _round_up(C, 128)
    max_cols = max(128, (target_bytes // (sub * bytes_per_elem)) // 128 * 128)
    col_tile = min(c_pad, max_cols, max_col_tile)
    max_rows = max(sub, (target_bytes // (col_tile * bytes_per_elem)) // sub * sub)
    row_tile = min(_round_up(B, sub), max_rows)
    return row_tile, col_tile


def _int_pow(base, n):
    """base ** n for a small non-negative integer n using only VPU multiplies."""
    if n == 0:
        return jnp.ones_like(base)
    result = None
    cur = base
    while n:
        if n & 1:
            result = cur if result is None else result * cur
        n >>= 1
        if n:
            cur = cur * cur
    return result


def _asl_kernel(x_ref, y_ref, out_ref, *,
                row_tile, col_tile, row_chunk, batch, num_classes,
                gamma_neg, gamma_pos, clip, eps,
                mask_rows, mask_cols, use_binary_path, use_int_pow):
    i = pl.program_id(0)
    j = pl.program_id(1)

    @pl.when(j == 0)
    def _init():
        out_ref[...] = jnp.zeros_like(out_ref)

    col_chunks = col_tile // 128
    row_groups = row_tile // row_chunk
    row0 = i * row_tile
    col0 = j * col_tile

    # Column (lane) masks are constant across the row loop -> hoist them.
    col_masks = None
    if mask_cols:
        lane = jax.lax.broadcasted_iota(jnp.int32, (row_chunk, 128), 1)
        col_masks = [(col0 + c * 128 + lane) < num_classes
                     for c in range(col_chunks)]

    def chunk_loss(xb, yb):
        """Per-element ASL loss for one (row_chunk, 128) f32 chunk."""
        # sigmoid(x) = 0.5*tanh(0.5*x) + 0.5  -> single EUP op + 2 VPU ops.
        xs_pos = 0.5 * jnp.tanh(0.5 * xb) + 0.5
        xs_neg = 1.0 - xs_pos
        if clip is not None and clip > 0:
            xs_neg = jnp.minimum(xs_neg + clip, 1.0)   # in-place clip in torch

        if use_binary_path:
            # Binarized targets: one log + one select replaces the two-log form.
            is_pos = yb > 0.0
            p = jnp.where(is_pos, xs_pos, xs_neg)
            loss = jnp.log(jnp.maximum(p, eps))
            if gamma_pos > 0 or gamma_neg > 0:
                base = 1.0 - p
                if use_int_pow:
                    gp, gn = int(gamma_pos), int(gamma_neg)
                    if gp == gn:
                        w = _int_pow(base, gp)
                    else:
                        w = jnp.where(is_pos, _int_pow(base, gp), _int_pow(base, gn))
                else:
                    gamma = jnp.where(is_pos, jnp.float32(gamma_pos),
                                      jnp.float32(gamma_neg))
                    w = jnp.power(base, gamma)
                loss = loss * w
            return loss

        # General (soft-target) path: literal translation of the torch forward.
        anti = 1.0 - yb
        loss = yb * jnp.log(jnp.maximum(xs_pos, eps))
        loss = loss + anti * jnp.log(jnp.maximum(xs_neg, eps))
        if gamma_pos > 0 or gamma_neg > 0:
            base = 1.0 - xs_pos * yb - xs_neg * anti
            gamma = gamma_pos * yb + gamma_neg * anti
            loss = loss * jnp.power(base, gamma)
        return loss

    def row_body(r, acc):
        r0 = pl.multiple_of(r * row_chunk, row_chunk)
        row_mask = None
        if mask_rows:
            rows = jax.lax.broadcasted_iota(jnp.int32, (row_chunk, 128), 0)
            row_mask = (row0 + r0 + rows) < batch

        for c in range(col_chunks):
            xb = x_ref[pl.ds(r0, row_chunk), pl.ds(c * 128, 128)].astype(jnp.float32)
            yb = y_ref[pl.ds(r0, row_chunk), pl.ds(c * 128, 128)].astype(jnp.float32)
            loss = chunk_loss(xb, yb)

            mask = row_mask
            if mask_cols:
                mask = col_masks[c] if mask is None else jnp.logical_and(mask, col_masks[c])
            if mask is not None:
                # Padded lanes may hold NaN/Inf garbage -> select, never multiply.
                loss = jnp.where(mask, loss, 0.0)

            # Tree-fold sublanes down to (8,128), then accumulate (pure VPU adds).
            rc = row_chunk
            while rc > 8:
                rc //= 2
                loss = loss[:rc, :] + loss[rc:, :]
            acc = acc + loss
        return acc

    unroll = row_groups if row_groups <= 4 else 2
    acc = jax.lax.fori_loop(0, row_groups, row_body,
                            jnp.zeros((8, 128), jnp.float32), unroll=unroll)
    out_ref[0] += acc


def asymmetric_loss_optimized(x, y, *, gamma_neg=GAMMA_NEG, gamma_pos=GAMMA_POS,
                              clip=CLIP, eps=EPS, assume_binary_targets=True,
                              row_tile=None, col_tile=None):
    """Pallas TPU implementation of AsymmetricLossOptimized.forward (scalar loss).

    assume_binary_targets=True follows the module's documented contract
    ("targets: multi-label binarized vector") and enables the fused single-log
    / integer-power fast path.  Pass False for soft (non 0/1) targets to get
    the literal torch math.
    """
    assert x.shape == y.shape and x.ndim == 2
    B, C = x.shape

    sub = max(_sublane_multiple(x.dtype), _sublane_multiple(y.dtype))
    bytes_per_elem = jnp.dtype(x.dtype).itemsize + jnp.dtype(y.dtype).itemsize
    auto_rt, auto_ct = _choose_tiles(B, C, sub, bytes_per_elem)
    rt = auto_rt if row_tile is None else row_tile
    ct = auto_ct if col_tile is None else col_tile
    # Guarantee >=2 row tiles whenever the batch allows it, so the "parallel"
    # row axis shards across v7x's two TensorCores (negligible cost elsewhere).
    if row_tile is None and rt >= B and B > sub:
        rt = _round_up((B + 1) // 2, sub)
    assert rt % sub == 0 and ct % 128 == 0

    grid = (pl.cdiv(B, rt), pl.cdiv(C, ct))
    mask_rows = (B % rt) != 0
    mask_cols = (C % ct) != 0

    use_binary_path = bool(assume_binary_targets)
    use_int_pow = (float(gamma_pos).is_integer() and float(gamma_neg).is_integer()
                   and 0 <= gamma_pos <= 16 and 0 <= gamma_neg <= 16)

    kernel = functools.partial(
        _asl_kernel,
        row_tile=rt, col_tile=ct, row_chunk=sub, batch=B, num_classes=C,
        gamma_neg=float(gamma_neg), gamma_pos=float(gamma_pos),
        clip=clip, eps=float(eps),
        mask_rows=mask_rows, mask_cols=mask_cols,
        use_binary_path=use_binary_path, use_int_pow=use_int_pow)

    block_bytes = rt * ct * bytes_per_elem              # combined x + y block
    vmem_limit = int(min(64 << 20, max(16 << 20, 4 * block_bytes + (2 << 20))))

    partials = pl.pallas_call(
        kernel,
        out_shape=jax.ShapeDtypeStruct((grid[0], 8, 128), jnp.float32),
        grid_spec=pltpu.PrefetchScalarGridSpec(
            num_scalar_prefetch=0,
            grid=grid,
            in_specs=[
                pl.BlockSpec((rt, ct), lambda i, j: (i, j)),
                pl.BlockSpec((rt, ct), lambda i, j: (i, j)),
            ],
            # Per-row-tile accumulator block, resident across the class axis.
            out_specs=pl.BlockSpec((1, 8, 128), lambda i, j: (i, 0, 0)),
        ),
        compiler_params=pltpu.CompilerParams(
            dimension_semantics=("parallel", "arbitrary"),
            vmem_limit_bytes=vmem_limit),
    )(x, y)

    total = jnp.sum(partials)
    return (-total / B) / C * 1000.0


def _reference_loss(x, y, gamma_neg=GAMMA_NEG, gamma_pos=GAMMA_POS,
                    clip=CLIP, eps=EPS):
    """Pure-JAX reference mirroring the torch forward, for a sanity check."""
    x = x.astype(jnp.float32)
    y = y.astype(jnp.float32)
    anti = 1.0 - y
    xs_pos = jax.nn.sigmoid(x)
    xs_neg = jnp.minimum(1.0 - xs_pos + clip, 1.0)
    loss = y * jnp.log(jnp.maximum(xs_pos, eps)) + anti * jnp.log(jnp.maximum(xs_neg, eps))
    w = jnp.power(1.0 - xs_pos * y - xs_neg * anti, gamma_pos * y + gamma_neg * anti)
    loss = loss * w
    return (-jnp.sum(loss) / x.shape[0]) / y.shape[1] * 1000.0


if __name__ == "__main__":
    key = jax.random.PRNGKey(0)
    kx, ky = jax.random.split(key)

    # Small multi-label problem: 16 samples, 128 classes (2x1 grid after the
    # v7x-friendly row split; unmasked fast path).
    B, C = 16, 128
    x = jax.random.normal(kx, (B, C), dtype=jnp.float32)
    y = jax.random.bernoulli(ky, p=0.3, shape=(B, C)).astype(jnp.float32)
    out = jax.block_until_ready(asymmetric_loss_optimized(x, y))
    ref = _reference_loss(x, y)
    assert jnp.allclose(out, ref, rtol=1e-3, atol=1e-4), (out, ref)

    # Same inputs through the general (soft-target) path for coverage.
    out_soft = jax.block_until_ready(
        asymmetric_loss_optimized(x, y, assume_binary_targets=False))
    assert jnp.allclose(out_soft, ref, rtol=1e-3, atol=1e-4), (out_soft, ref)

    # Ragged shapes with forced small tiles: exercises cdiv grid + edge masking.
    B2, C2 = 20, 300
    x2 = jax.random.normal(kx, (B2, C2), dtype=jnp.float32)
    y2 = jax.random.bernoulli(ky, p=0.3, shape=(B2, C2)).astype(jnp.float32)
    out2 = jax.block_until_ready(
        asymmetric_loss_optimized(x2, y2, row_tile=8, col_tile=128))
    ref2 = _reference_loss(x2, y2)
    assert jnp.allclose(out2, ref2, rtol=1e-3, atol=1e-4), (out2, ref2)

    print("KERNEL_OK")
</pallas_src>

<mosaic_0001>
module attributes {stable_mosaic.version = 11 : i64} {
  func.func @_asl_kernel(%arg0: i32, %arg1: i32, %arg2: memref<8x128xf32, #tpu.memory_space<vmem>>, %arg3: memref<8x128xf32, #tpu.memory_space<vmem>>, %arg4: memref<1x8x128xf32, #tpu.memory_space<vmem>>) attributes {dimension_semantics = [#tpu.dimension_semantics<parallel>, #tpu.dimension_semantics<arbitrary>], iteration_bounds = array<i64: 2, 1>, scalar_prefetch = 0 : i64, scratch_operands = 0 : i64, tpu.core_type = #tpu.core_type<tc>, window_params = [{transform_indices = @transform_0, window_bounds = array<i64: 8, 128>}, {transform_indices = @transform_1, window_bounds = array<i64: 8, 128>}, {transform_indices = @transform_2, window_bounds = array<i64: 1, 8, 128>}]} {
    %c0_i32 = arith.constant 0 : i32
    %0 = arith.cmpi eq, %arg1, %c0_i32 : i32
    %1 = arith.extui %0 : i1 to i32
    %c0_i32_0 = arith.constant 0 : i32
    %2 = arith.cmpi ne, %1, %c0_i32_0 : i32
    scf.if %2 {
      %cst_18 = arith.constant 0.000000e+00 : f32
      %42 = vector.broadcast %cst_18 : f32 to vector<1x8x128xf32>
      %c0_19 = arith.constant 0 : index
      %c0_20 = arith.constant 0 : index
      %c0_21 = arith.constant 0 : index
      %43 = vector.load %arg4[%c0_19, %c0_20, %c0_21] : memref<1x8x128xf32, #tpu.memory_space<vmem>>, vector<1x8x128xf32>
      tpu.vector_store %arg4[%c0_19, %c0_20, %c0_21], %42 {strides = array<i32>} : memref<1x8x128xf32, #tpu.memory_space<vmem>>, vector<1x8x128xf32>,
    } else {
    }
    %cst = arith.constant 0.000000e+00 : f32
    %3 = vector.broadcast %cst : f32 to vector<8x128xf32>
    %c0_i32_1 = arith.constant 0 : i32
    %c8_i32 = arith.constant 8 : i32
    %4 = arith.muli %c0_i32_1, %c8_i32 : i32
    %5 = tpu.assume_multiple %4, 8 : i32
    %6 = arith.index_cast %5 : i32 to index
    %c0 = arith.constant 0 : index
    %7 = vector.load %arg2[%6, %c0] : memref<8x128xf32, #tpu.memory_space<vmem>>, vector<8x128xf32>
    %8 = arith.index_cast %5 : i32 to index
    %c0_2 = arith.constant 0 : index
    %9 = vector.load %arg3[%8, %c0_2] : memref<8x128xf32, #tpu.memory_space<vmem>>, vector<8x128xf32>
    %cst_3 = arith.constant 5.000000e-01 : f32
    %10 = vector.broadcast %cst_3 : f32 to vector<8x128xf32>
    %11 = arith.mulf %10, %7 : vector<8x128xf32>
    %12 = math.tanh %11 : vector<8x128xf32>
    %cst_4 = arith.constant 5.000000e-01 : f32
    %13 = vector.broadcast %cst_4 : f32 to vector<8x128xf32>
    %14 = arith.mulf %13, %12 : vector<8x128xf32>
    %cst_5 = arith.constant 5.000000e-01 : f32
    %15 = vector.broadcast %cst_5 : f32 to vector<8x128xf32>
    %16 = arith.addf %14, %15 : vector<8x128xf32>
    %cst_6 = arith.constant 1.000000e+00 : f32
    %17 = vector.broadcast %cst_6 : f32 to vector<8x128xf32>
    %18 = arith.subf %17, %16 : vector<8x128xf32>
    %cst_7 = arith.constant 5.000000e-02 : f32
    %19 = vector.broadcast %cst_7 : f32 to vector<8x128xf32>
    %20 = arith.addf %18, %19 : vector<8x128xf32>
    %cst_8 = arith.constant 1.000000e+00 : f32
    %21 = vector.broadcast %cst_8 : f32 to vector<8x128xf32>
    %22 = arith.minimumf %20, %21 : vector<8x128xf32>
    %cst_9 = arith.constant 0.000000e+00 : f32
    %23 = vector.broadcast %cst_9 : f32 to vector<8x128xf32>
    %24 = arith.cmpf ogt, %9, %23 : vector<8x128xf32>
    %25 = arith.select %24, %16, %22 : vector<8x128xi1>, vector<8x128xf32>
    %cst_10 = arith.constant 9.99999974E-6 : f32
    %26 = vector.broadcast %cst_10 : f32 to vector<8x128xf32>
    %27 = arith.maximumf %25, %26 : vector<8x128xf32>
    %28 = math.log %27 : vector<8x128xf32>
    %cst_11 = arith.constant 1.000000e+00 : f32
    %29 = vector.broadcast %cst_11 : f32 to vector<8x128xf32>
    %30 = arith.subf %29, %25 : vector<8x128xf32>
    %31 = arith.mulf %30, %30 : vector<8x128xf32>
    %32 = arith.mulf %31, %31 : vector<8x128xf32>
    %33 = arith.select %24, %30, %32 : vector<8x128xi1>, vector<8x128xf32>
    %34 = arith.mulf %28, %33 : vector<8x128xf32>
    %35 = arith.addf %3, %34 : vector<8x128xf32>
    %c1_i32 = arith.constant 1 : i32
    %c0_12 = arith.constant 0 : index
    %c0_13 = arith.constant 0 : index
    %c0_14 = arith.constant 0 : index
    %36 = vector.load %arg4[%c0_12, %c0_13, %c0_14] : memref<1x8x128xf32, #tpu.memory_space<vmem>>, vector<1x8x128xf32>
    %37 = vector.shape_cast %36 : vector<1x8x128xf32> to vector<8x128xf32>
    %38 = arith.addf %37, %35 : vector<8x128xf32>
    %c0_15 = arith.constant 0 : index
    %c0_16 = arith.constant 0 : index
    %c0_17 = arith.constant 0 : index
    %39 = vector.load %arg4[%c0_15, %c0_16, %c0_17] : memref<1x8x128xf32, #tpu.memory_space<vmem>>, vector<1x8x128xf32>
    %40 = vector.shape_cast %39 : vector<1x8x128xf32> to vector<8x128xf32>
    %41 = vector.shape_cast %38 : vector<8x128xf32> to vector<1x8x128xf32>
    tpu.vector_store %arg4[%c0_15, %c0_16, %c0_17], %41 {strides = array<i32>} : memref<1x8x128xf32, #tpu.memory_space<vmem>>, vector<1x8x128xf32>,
    return
  }
  func.func @transform_0(%arg0: i32, %arg1: i32) -> (i32, i32) {
    %c0_i32 = arith.constant 0 : i32
    return %arg0, %arg1 : i32, i32
  }
  func.func @transform_1(%arg0: i32, %arg1: i32) -> (i32, i32) {
    %c0_i32 = arith.constant 0 : i32
    return %arg0, %arg1 : i32, i32
  }
  func.func @transform_2(%arg0: i32, %arg1: i32) -> (i32, i32, i32) {
    %c0_i32 = arith.constant 0 : i32
    %c0_i32_0 = arith.constant 0 : i32
    %c0_i32_1 = arith.constant 0 : i32
    return %arg0, %c0_i32, %c0_i32_0 : i32, i32, i32
  }
}

</mosaic_0001>

<llo_original>
// kernel: tpu_custom_call.1
$region0: #{tpu_custom_call.1}
  #allocation0 [shape = 'u32[]', space=smem, size = 0x4, offset = 0x4, fixed_abs, tag = 'smem constant byte address 0x4 - core index']
  #allocation1 [shape = 'u32[144,128]{1,0:T(1,128)}', space=vmem, size = 0x12000, scoped, tag = 'internal scratch']
  %s0 = inlined_call_operand.hbm [shape: f32[16,128], index: 0, kind: input, shape index: {}]
  %s1 = inlined_call_operand.hbm [shape: f32[16,128], index: 1, kind: input, shape index: {}]
  %s2 = inlined_call_operand.hbm [shape: f32[2,8,128], index: 2, kind: output, shape index: {}]
  %s3 = sld [smem:[#allocation0]]
  $region53: #{tpu_custom_call.1} parent=0
    _
  %s5 = ssub.s32 1, %s3
  %s6 = scalar_select 0, %s5, %s3
  $region1: #{tpu_custom_call.1} parent=0
    #allocation2 [shape = 'u8[8192]{0}', space=vmem, size = 0x2000, scoped, tag = 'input window, operand 0']
    #allocation3 [shape = 's32[2]{0}', space=sflag, size = 0x8, scoped, tag = 'scoped memory for tpu_custom_call.1']
    #allocation4 [shape = 's32[2]{0}', space=sflag, size = 0x8, scoped, tag = 'scoped memory for tpu_custom_call.1']
    #allocation5 [shape = 'u8[8192]{0}', space=vmem, size = 0x2000, scoped, tag = 'input window, operand 1']
    #allocation6 [shape = 's32[2]{0}', space=sflag, size = 0x8, scoped, tag = 'scoped memory for tpu_custom_call.1']
    #allocation7 [shape = 'u8[8192]{0}', space=vmem, size = 0x2000, scoped, tag = 'output window, operand 0']
    %7 = vsyncpa [#allocation3], 0
    %s8 = scalar_lea.sflag [#allocation3], 1
    %9 = vsyncpa %s8, 0
    %10 = vsyncpa [#allocation6], 0
    %s11 = scalar_lea.sflag [#allocation6], 1
    %12 = vsyncpa %s11, 0
    %13 = vsyncpa [#allocation4], 0
    %s14 = scalar_lea.sflag [#allocation4], 1
    %15 = vsyncpa %s14, 0
    loop: start=0, step=1, limit=4
    $region2: #{tpu_custom_call.1} parent=1 // loop_pre_header
      _
    $region3: #{tpu_custom_call.1} parent=1 // loop_header
      %s17 = sphi 0, %s21
      %p18 = scmp.ge.s32.totalorder %s17, 4
      %s24 = sphi 0, %s36
      %s25 = sphi 0, %s32
      %s26 = sphi 0, %s24
      %s27 = sphi 0, %s25
      %s28 = sphi 0, %s26
      %s29 = sphi 0, %s27
      %s41 = sphi 0, %s43
      %s44 = sphi 0, %s41
      %s45 = sphi 0, %s44
      %s61 = sphi 0, %s45
      %s69 = sphi 0, %s71
      %s72 = sphi 0, %s69
      %s73 = sphi 0, %s72
      %s89 = sphi 0, %s73
      %s95 = sphi 0, %s97
      %s98 = sphi 0, %s95
      %s99 = sphi 0, %s98
      %s115 = sphi 0, %s99
    $region4: #{tpu_custom_call.1} parent=1 // loop_header_branch
      %20 = sbr.rel (%p18) target = $region8
    $region5: #{tpu_custom_call.1} parent=1 // loop_body
      %s22 = ssub.s32 %s17, 1
      %s23 = ssub.s32 %s17, 2
      %s30 = sadd.s32 1, %s25
      %p31 = scmp.ge.s32.totalorder %s30, 1
      %s32 = scalar_select %p31, 0, %s30
      %s33 = sadd.s32 1, %s24
      %s34 = scalar_select %p31, %s33, %s24
      %p35 = scmp.ge.s32.totalorder %s34, 2
      %s36 = scalar_select %p35, 0, %s34
      %s37 = ssub.s32 %s24, %s36
      %s38 = ssub.s32 %s25, %s32
      %s39 = sor.u32 %s37, %s38
      %p40 = scmp.eq.s32.totalorder %s39, 0
      %s42 = sadd.s32 %s41, 1
      %s43 = scalar_select %p40, %s41, %s42
      %p46 = pneg %p40
      %p47 = scmp.eq.s32.totalorder %s17, 1
      %p48 = por %p46, %p47
      %p49 = scmp.ne.s32.totalorder %s41, %s44
      %p50 = scmp.eq.s32.totalorder %s17, 0
      %p51 = por %p49, %p50
      %p52 = scmp.ne.s32.totalorder %s41, %s44
      %p53 = scmp.eq.s32.totalorder %s22, 1
      %p54 = por %p52, %p53
      %p55 = scmp.ne.s32.totalorder %s44, %s45
      %p56 = scmp.eq.s32.totalorder %s22, 0
      %p57 = por %p55, %p56
      %p58 = scmp.ne.s32.totalorder %s44, %s45
      %p59 = scmp.eq.s32.totalorder %s23, 1
      %p60 = por %p58, %p59
      %p62 = scmp.ne.s32.totalorder %s45, %s61
      %p63 = scmp.eq.s32.totalorder %s23, 0
      %p64 = por %p62, %p63
      %s65 = ssub.s32 %s24, %s36
      %s66 = ssub.s32 %s25, %s32
      %s67 = sor.u32 %s65, %s66
      %p68 = scmp.eq.s32.totalorder %s67, 0
      %s70 = sadd.s32 %s69, 1
      %s71 = scalar_select %p68, %s69, %s70
      %p74 = pneg %p68
      %p75 = scmp.eq.s32.totalorder %s17, 1
      %p76 = por %p74, %p75
      %p77 = scmp.ne.s32.totalorder %s69, %s72
      %p78 = scmp.eq.s32.totalorder %s17, 0
      %p79 = por %p77, %p78
      %p80 = scmp.ne.s32.totalorder %s69, %s72
      %p81 = scmp.eq.s32.totalorder %s22, 1
      %p82 = por %p80, %p81
      %p83 = scmp.ne.s32.totalorder %s72, %s73
      %p84 = scmp.eq.s32.totalorder %s22, 0
      %p85 = por %p83, %p84
      %p86 = scmp.ne.s32.totalorder %s72, %s73
      %p87 = scmp.eq.s32.totalorder %s23, 1
      %p88 = por %p86, %p87
      %p90 = scmp.ne.s32.totalorder %s73, %s89
      %p91 = scmp.eq.s32.totalorder %s23, 0
      %p92 = por %p90, %p91
      %s93 = ssub.s32 %s24, %s36
      %p94 = scmp.eq.s32.totalorder %s93, 0
      %s96 = sadd.s32 %s95, 1
      %s97 = scalar_select %p94, %s95, %s96
      %p100 = pneg %p94
      %p101 = scmp.eq.s32.totalorder %s17, 1
      %p102 = por %p100, %p101
      %p103 = scmp.ne.s32.totalorder %s95, %s98
      %p104 = scmp.eq.s32.totalorder %s17, 0
      %p105 = por %p103, %p104
      %p106 = scmp.ne.s32.totalorder %s95, %s98
      %p107 = scmp.eq.s32.totalorder %s22, 1
      %p108 = por %p106, %p107
      %p109 = scmp.ne.s32.totalorder %s98, %s99
      %p110 = scmp.eq.s32.totalorder %s22, 0
      %p111 = por %p109, %p110
      %p112 = scmp.ne.s32.totalorder %s98, %s99
      %p113 = scmp.eq.s32.totalorder %s23, 1
      %p114 = por %p112, %p113
      %p116 = scmp.ne.s32.totalorder %s99, %s115
      %p117 = scmp.eq.s32.totalorder %s23, 0
      %p118 = por %p116, %p117
      %p119 = scmp.le.s32.totalorder 1, %s17
      %p120 = scmp.lt.s32.totalorder %s17, 3
      %p121 = pnand %p119, %p120
      %p122 = pneg %p121
      // Predicated region
      $region9: #{tpu_custom_call.1} parent=5 // pred_check
        _
      $region10: #{tpu_custom_call.1} parent=5 // pred_check_branch
        %124 = sbr.rel (%p121) target = $region12
      $region11: #{tpu_custom_call.1} parent=5 // pred_region
        %s125 = ssub.s32 %s17, 1
      $region12: #{tpu_custom_call.1} parent=5 // pred_fallthru
        _
      %p126 = scmp.lt.s32.totalorder %s17, 2
      // Predicated region
      $region13: #{tpu_custom_call.1} parent=5 // pred_check
        %p127 = pneg %p126
      $region14: #{tpu_custom_call.1} parent=5 // pred_check_branch
        %129 = sbr.rel (%p127) target = $region16
      $region15: #{tpu_custom_call.1} parent=5 // pred_region
        // Predicated region
        $region17: #{tpu_custom_call.1} parent=15 // pred_check
          %p130 = pneg %p51
        $region18: #{tpu_custom_call.1} parent=15 // pred_check_branch
          %132 = sbr.rel (%p130) target = $region20
        $region19: #{tpu_custom_call.1} parent=15 // pred_region
          %s133 = sand.u32 %s41, 1
          %s134 = scalar_lea.sflag [#allocation3], %s133
          %s135 = sand.u32 %s41, 1
          %s136 = smul.addr %s135, 8
          %s137 = scalar_lea.vmem [#allocation2], %s136
          %s139 = ssub.s32 128, 128
          %140 = vsyncadd %s134, %s139
          %s141 = sadd.s32 %s25, %s24
          %s142 = smul.addr %s141, 128
          %s143 = scalar_lea.hbm %s0, %s142
          %s145 = sshll.u32 %s137, 4
          %s146 = int_to_ptr.vmem [resolvable:$true] %s145
          %148 = dma.hbm_to_vmem [thread:$0]  %s143, 128, %s146, %s134
        $region20: #{tpu_custom_call.1} parent=15 // pred_fallthru
          _
        // Predicated region
        $region21: #{tpu_custom_call.1} parent=15 // pred_check
          %p149 = pneg %p79
        $region22: #{tpu_custom_call.1} parent=15 // pred_check_branch
          %151 = sbr.rel (%p149) target = $region24
        $region23: #{tpu_custom_call.1} parent=15 // pred_region
          %s152 = sand.u32 %s69, 1
          %s153 = scalar_lea.sflag [#allocation6], %s152
          %s154 = sand.u32 %s69, 1
          %s155 = smul.addr %s154, 8
          %s156 = scalar_lea.vmem [#allocation5], %s155
          %s158 = ssub.s32 128, 128
          %159 = vsyncadd %s153, %s158
          %s160 = sadd.s32 %s25, %s24
          %s161 = smul.addr %s160, 128
          %s162 = scalar_lea.hbm %s1, %s161
          %s164 = sshll.u32 %s156, 4
          %s165 = int_to_ptr.vmem [resolvable:$true] %s164
          %167 = dma.hbm_to_vmem [thread:$0]  %s162, 128, %s165, %s153
        $region24: #{tpu_custom_call.1} parent=15 // pred_fallthru
          _
      $region16: #{tpu_custom_call.1} parent=5 // pred_fallthru
        _
      %p168 = scmp.le.s32.totalorder 1, %s17
      %p169 = scmp.lt.s32.totalorder %s17, 3
      %p170 = pnand %p168, %p169
      %p171 = pneg %p170
      // Predicated region
      $region25: #{tpu_custom_call.1} parent=5 // pred_check
        _
      $region26: #{tpu_custom_call.1} parent=5 // pred_check_branch
        %173 = sbr.rel (%p170) target = $region28
      $region27: #{tpu_custom_call.1} parent=5 // pred_region
        %s174 = ssub.s32 %s17, 1
        %s175 = sand.u32 %s44, 1
        %s176 = scalar_lea.sflag [#allocation3], %s175
        %s177 = sand.u32 %s44, 1
        %s178 = smul.addr %s177, 8
        %s179 = scalar_lea.vmem [#allocation2], %s178
        // Predicated region
        $region29: #{tpu_custom_call.1} parent=27 // pred_check
          %p180 = pneg %p57
        $region30: #{tpu_custom_call.1} parent=27 // pred_check_branch
          %182 = sbr.rel (%p180) target = $region32
        $region31: #{tpu_custom_call.1} parent=27 // pred_region
          %183 = dma.done %s176, 128
        $region32: #{tpu_custom_call.1} parent=27 // pred_fallthru
          _
        %s184 = sand.u32 %s72, 1
        %s185 = scalar_lea.sflag [#allocation6], %s184
        %s186 = sand.u32 %s72, 1
        %s187 = smul.addr %s186, 8
        %s188 = scalar_lea.vmem [#allocation5], %s187
        // Predicated region
        $region33: #{tpu_custom_call.1} parent=27 // pred_check
          %p189 = pneg %p85
        $region34: #{tpu_custom_call.1} parent=27 // pred_check_branch
          %191 = sbr.rel (%p189) target = $region36
        $region35: #{tpu_custom_call.1} parent=27 // pred_region
          %192 = dma.done %s185, 128
        $region36: #{tpu_custom_call.1} parent=27 // pred_fallthru
          _
        %s193 = sand.u32 %s44, 1
        %s194 = scalar_lea.sflag [#allocation3], %s193
        %s195 = sand.u32 %s44, 1
        %s196 = smul.addr %s195, 8
        %s197 = scalar_lea.vmem [#allocation2], %s196
        %p198 = pneg %p57
        %p199 = pneg %p54
        %s200 = sand.u32 %s72, 1
        %s201 = scalar_lea.sflag [#allocation6], %s200
        %s202 = sand.u32 %s72, 1
        %s203 = smul.addr %s202, 8
        %s204 = scalar_lea.vmem [#allocation5], %s203
        %p205 = pneg %p85
        %p206 = pneg %p82
        %p207 = pneg %p111
        %p208 = pneg %p108
        %s209 = sand.u32 %s98, 1
        %s210 = scalar_lea.sflag [#allocation4], %s209
        %s211 = sand.u32 %s98, 1
        %s212 = smul.addr %s211, 8
        %s213 = scalar_lea.vmem [#allocation7], %s212
        %p214 = scmp.eq.s32.totalorder %s27, 0
        // Predicated region
        $region37: #{tpu_custom_call.1} parent=27 // pred_check
          %p215 = pneg %p214
        $region38: #{tpu_custom_call.1} parent=27 // pred_check_branch
          %217 = sbr.rel (%p215) target = $region40
        $region39: #{tpu_custom_call.1} parent=27 // pred_region
          %218 = vst [vmem:[%s213] sm:$0xff] 0.0
        $region40: #{tpu_custom_call.1} parent=27 // pred_fallthru
          _
        %v219 = vld [vmem:[%s179] sm:$0xff]
        %v220 = vld [vmem:[%s188] sm:$0xff]
        %v221 = vmul.f32 %v219, 0.5
        %v222 = vtanh.pop %v221
        %v223 = vmul.f32 %v222, 0.5
        %v224 = vadd.f32 %v223, 0.5
        %v225 = vsub.f32 1.0, %v224
        %v226 = vadd.f32 %v225, 0.05
        %v227 = vmin.f32 %v226, 1.0
        %vm228 = vcmp.gt.f32.partialorder %v220, 0.0
        %v229 = vsel %vm228, %v224, %v227
        %v230 = vmax.f32 %v229, 1e-05
        %v231 = vlog2.pop %v230
        %v232 = vmul.f32 %v231, 0.6931472
        %v233 = vsub.f32 1.0, %v229
        %v234 = vmul.f32 %v233, %v233
        %v235 = vmul.f32 %v234, %v234
        %v236 = vsel %vm228, %v233, %v235
        %v237 = vmul.f32 %v232, %v236
        %v238 = vadd.f32 %v237, 0.0
        %v239 = vld [vmem:[%s213] sm:$0xff]
        %v240 = vadd.f32 %v239, %v238
        %241 = vst [vmem:[%s213] sm:$0xff] %v240
        %s242 = sand.u32 %s98, 1
        %s243 = scalar_lea.sflag [#allocation4], %s242
        %s244 = sand.u32 %s98, 1
        %s245 = smul.addr %s244, 8
        %s246 = scalar_lea.vmem [#allocation7], %s245
        // Predicated region
        $region41: #{tpu_custom_call.1} parent=27 // pred_check
          %p247 = pneg %p108
        $region42: #{tpu_custom_call.1} parent=27 // pred_check_branch
          %249 = sbr.rel (%p247) target = $region44
        $region43: #{tpu_custom_call.1} parent=27 // pred_region
          %s251 = ssub.s32 128, 128
          %252 = vsyncadd %s243, %s251
          %s253 = smul.addr %s26, 128
          %s254 = scalar_lea.hbm %s2, %s253
          %s256 = sshll.u32 %s246, 4
          %s257 = int_to_ptr.vmem [resolvable:$true] %s256
          %259 = dma.vmem_to_hbm [thread:$0]  %s257, 128, %s254, %s243
        $region44: #{tpu_custom_call.1} parent=27 // pred_fallthru
          _
      $region28: #{tpu_custom_call.1} parent=5 // pred_fallthru
        _
      %p260 = scmp.le.s32.totalorder 2, %s17
      // Predicated region
      $region45: #{tpu_custom_call.1} parent=5 // pred_check
        %p261 = pneg %p260
      $region46: #{tpu_custom_call.1} parent=5 // pred_check_branch
        %263 = sbr.rel (%p261) target = $region48
      $region47: #{tpu_custom_call.1} parent=5 // pred_region
        %s264 = ssub.s32 %s17, 2
        // Predicated region
        $region49: #{tpu_custom_call.1} parent=47 // pred_check
          %p265 = pneg %p114
        $region50: #{tpu_custom_call.1} parent=47 // pred_check_branch
          %267 = sbr.rel (%p265) target = $region52
        $region51: #{tpu_custom_call.1} parent=47 // pred_region
          %s268 = sand.u32 %s99, 1
          %s269 = scalar_lea.sflag [#allocation4], %s268
          %s270 = sand.u32 %s99, 1
          %s271 = smul.addr %s270, 8
          %s272 = scalar_lea.vmem [#allocation7], %s271
          %273 = dma.done %s269, 128
        $region52: #{tpu_custom_call.1} parent=47 // pred_fallthru
          _
      $region48: #{tpu_custom_call.1} parent=5 // pred_fallthru
        _
    $region6: #{tpu_custom_call.1} parent=1 // loop_footer
      %s21 = sadd.s32 1, %s17
    $region7: #{tpu_custom_call.1} parent=1 // loop_footer_branch
      %16 = sbr.rel target = $region3
    $region8: #{tpu_custom_call.1} parent=1 // loop_exit
      _
    %274 = vsyncpa [#allocation3], 1
    %s275 = scalar_lea.sflag [#allocation3], 1
    %276 = vsyncpa %s275, 1
    %277 = vsyncpa [#allocation6], 1
    %s278 = scalar_lea.sflag [#allocation6], 1
    %279 = vsyncpa %s278, 1
    %280 = vsyncpa [#allocation4], 1
    %s281 = scalar_lea.sflag [#allocation4], 1
    %282 = vsyncpa %s281, 1

</llo_original>
